<compile_context>
chip_gen: v7x
topology: tpu7x:2x2x1
jax: 0.10.0
libtpu: 0.0.40
codegen_flags: <defaults>
</compile_context>

<pallas_src>
import jax
import jax.numpy as jnp
from jax.experimental import pallas as pl
from jax.experimental.pallas import tpu as pltpu


def _cdiv(a, b):
    return -(-a // b)


def _round_up(v, m):
    return _cdiv(v, m) * m


def _sigmoid(z):
    # sigmoid(z) == 0.5 * tanh(0.5 * z) + 0.5 (exact identity); tanh is a single
    # EUP op, keeping the VALU slots (the potential bottleneck once vregs are
    # full) free of divide/Newton sequences.
    return 0.5 * jnp.tanh(0.5 * z) + 0.5


def mlp_kernel(params_ref, x_ref, o_ref):
    # params_ref: (17,) f32 in SMEM, layout:
    #   [0:8]   w1 (4,2) row-major  -> w1[j,k] at 2*j + k
    #   [8:12]  b1 (4,)
    #   [12:16] w2 (4,)             (fc2 weight row)
    #   [16]    b2
    # x_ref: (2, R, 128) f32 VMEM  -- feature-planar, batch on (sublane, lane)
    # o_ref: (R, 128)    f32 VMEM  -- lane- and sublane-dense store
    x0 = x_ref[0]                       # (R, 128), full (8,128) vreg occupancy
    x1 = x_ref[1]                       # (R, 128)

    # fc1 (K=2) + sigmoid + fc2 (K=4), fully unrolled on the VPU/EUP (no MXU:
    # a K=2/K=4 contraction would waste >97% of the MXU and add push/pop latency).
    y = params_ref[16]                  # b2 (scalar; broadcasts on first add)
    for j in range(4):
        hj = (params_ref[2 * j] * x0
              + params_ref[2 * j + 1] * x1
              + params_ref[8 + j])
        y = y + params_ref[12 + j] * _sigmoid(hj)
    o_ref[...] = _sigmoid(y)            # (R, 128)


def mlp_forward_planar(x_planar, w1, b1, w2, b2, *, max_rows_per_step=1024):
    """x_planar: (2, B) feature-planar input (preferred layout, zero extra copies).

    w1: (4, 2), b1: (4,), w2: (1, 4), b2: (1,)  (PyTorch nn.Linear shapes).
    Returns (B, 1) float32.
    """
    assert x_planar.ndim == 2 and x_planar.shape[0] == 2, x_planar.shape
    B = x_planar.shape[1]

    # One packed f32 parameter slab (17 scalars) -> a single tiny SMEM transfer,
    # resident across all grid steps.
    params = jnp.concatenate(
        [w1.reshape(-1), b1.reshape(-1), w2.reshape(-1), b2.reshape(-1)]
    ).astype(jnp.float32)                                    # (17,)

    # Tile geometry: batch laid out as (rows, 128); each grid step processes an
    # (r_block, 128) slab (r_block <= 1024 rows => x tile <= 1 MiB, y tile
    # <= 0.5 MiB, double-buffered working set ~3 MiB -> fits v5e/v6e/v7x scoped
    # VMEM defaults).  Step count is forced even when > 1 so v7x's two
    # TensorCores split the "parallel" grid evenly.
    rows = _cdiv(B, 128)
    rows8 = _round_up(rows, 8)                       # sublane alignment
    n_steps = _cdiv(rows8, max_rows_per_step)
    if n_steps > 1 and n_steps % 2 != 0:
        n_steps += 1
    r_block = _round_up(_cdiv(rows8, n_steps), 8)
    rows_pad = n_steps * r_block
    B_pad = rows_pad * 128

    xp = x_planar.astype(jnp.float32)
    if B_pad != B:
        xp = jnp.pad(xp, ((0, 0), (0, B_pad - B)))   # pad batch (zeros are safe)
    xp = xp.reshape(2, rows_pad, 128)                # free reshape, no copy

    out = pl.pallas_call(
        mlp_kernel,
        out_shape=jax.ShapeDtypeStruct((rows_pad, 128), jnp.float32),
        grid=(n_steps,),
        in_specs=[
            pl.BlockSpec(memory_space=pltpu.MemorySpace.SMEM),      # params slab
            pl.BlockSpec((2, r_block, 128), lambda i: (0, i, 0)),   # x tile
        ],
        out_specs=pl.BlockSpec((r_block, 128), lambda i: (i, 0)),
        compiler_params=pltpu.CompilerParams(
            dimension_semantics=("parallel",),
        ),
    )(params, xp)

    # (rows_pad, 128) row-major is already flat batch order -> free reshape.
    return out.reshape(B_pad, 1)[:B]


def mlp_forward(x, w1, b1, w2, b2, **kw):
    """PyTorch-layout entry point: x is (B, 2), returns (B, 1).

    Does exactly one layout transpose to the planar (2, B) form; producers that
    can emit the planar layout should call mlp_forward_planar directly and skip
    that extra HBM pass entirely.
    """
    assert x.ndim == 2 and x.shape[1] == 2, x.shape
    return mlp_forward_planar(x.T, w1, b1, w2, b2, **kw)


if __name__ == "__main__":
    key = jax.random.PRNGKey(0)
    k_w1, k_b1, k_w2, k_b2, k_x1, k_x2, k_x3 = jax.random.split(key, 7)

    # PyTorch nn.Linear shapes: weight (out, in), bias (out,)
    w1 = jax.random.uniform(k_w1, (4, 2), minval=-0.5, maxval=0.5, dtype=jnp.float32)
    b1 = jax.random.uniform(k_b1, (4,), minval=-0.5, maxval=0.5, dtype=jnp.float32)
    w2 = jax.random.uniform(k_w2, (1, 4), minval=-0.5, maxval=0.5, dtype=jnp.float32)
    b2 = jax.random.uniform(k_b2, (1,), minval=-0.5, maxval=0.5, dtype=jnp.float32)

    def reference(x):
        h = jax.nn.sigmoid(x @ w1.T + b1)
        return jax.nn.sigmoid(h @ w2.T + b2)

    # 1) Tiny batch (single grid step, padded up to one (8,128) tile).
    x_small = jax.random.normal(k_x1, (8, 2), dtype=jnp.float32)
    out_small = jax.block_until_ready(mlp_forward(x_small, w1, b1, w2, b2))
    assert out_small.shape == (8, 1), out_small.shape
    assert jnp.allclose(out_small, reference(x_small), atol=1e-5, rtol=1e-5)

    # 2) Batch not a multiple of 128 (exercises the padding path).
    x_mid = jax.random.normal(k_x2, (1000, 2), dtype=jnp.float32)
    out_mid = jax.block_until_ready(mlp_forward(x_mid, w1, b1, w2, b2))
    assert out_mid.shape == (1000, 1), out_mid.shape
    assert jnp.allclose(out_mid, reference(x_mid), atol=1e-5, rtol=1e-5)

    # 3) Multi-step "parallel" grid via the zero-transpose planar entry point
    #    (small rows-per-step so the pipelined path is exercised at demo scale).
    x_big = jax.random.normal(k_x3, (4096, 2), dtype=jnp.float32)
    out_big = jax.block_until_ready(
        mlp_forward_planar(x_big.T, w1, b1, w2, b2, max_rows_per_step=8))
    assert out_big.shape == (4096, 1), out_big.shape
    assert jnp.allclose(out_big, reference(x_big), atol=1e-5, rtol=1e-5)

    print("KERNEL_OK")
</pallas_src>

<mosaic_0001>
module attributes {stable_mosaic.version = 11 : i64} {
  func.func @mlp_kernel(%arg0: i32, %arg1: memref<17xf32, #tpu.memory_space<smem>>, %arg2: memref<2x8x128xf32, #tpu.memory_space<vmem>>, %arg3: memref<8x128xf32, #tpu.memory_space<vmem>>) attributes {dimension_semantics = [#tpu.dimension_semantics<parallel>], iteration_bounds = array<i64: 1>, scalar_prefetch = 0 : i64, scratch_operands = 0 : i64, tpu.core_type = #tpu.core_type<tc>, window_params = [{transform_indices = @transform_0, window_bounds = array<i64: 17>}, {transform_indices = @transform_1, window_bounds = array<i64: 2, 8, 128>}, {transform_indices = @transform_2, window_bounds = array<i64: 8, 128>}]} {
    %c0 = arith.constant 0 : index
    %c0_0 = arith.constant 0 : index
    %c0_1 = arith.constant 0 : index
    %0 = vector.load %arg2[%c0, %c0_0, %c0_1] : memref<2x8x128xf32, #tpu.memory_space<vmem>>, vector<1x8x128xf32>
    %1 = vector.shape_cast %0 : vector<1x8x128xf32> to vector<8x128xf32>
    %c1 = arith.constant 1 : index
    %c0_2 = arith.constant 0 : index
    %c0_3 = arith.constant 0 : index
    %2 = vector.load %arg2[%c1, %c0_2, %c0_3] : memref<2x8x128xf32, #tpu.memory_space<vmem>>, vector<1x8x128xf32>
    %3 = vector.shape_cast %2 : vector<1x8x128xf32> to vector<8x128xf32>
    %c16 = arith.constant 16 : index
    %4 = memref.load %arg1[%c16] : memref<17xf32, #tpu.memory_space<smem>>
    %c0_4 = arith.constant 0 : index
    %5 = memref.load %arg1[%c0_4] : memref<17xf32, #tpu.memory_space<smem>>
    %6 = vector.broadcast %5 : f32 to vector<8x128xf32>
    %7 = arith.mulf %6, %1 : vector<8x128xf32>
    %c1_5 = arith.constant 1 : index
    %8 = memref.load %arg1[%c1_5] : memref<17xf32, #tpu.memory_space<smem>>
    %9 = vector.broadcast %8 : f32 to vector<8x128xf32>
    %10 = arith.mulf %9, %3 : vector<8x128xf32>
    %11 = arith.addf %7, %10 : vector<8x128xf32>
    %c8 = arith.constant 8 : index
    %12 = memref.load %arg1[%c8] : memref<17xf32, #tpu.memory_space<smem>>
    %13 = vector.broadcast %12 : f32 to vector<8x128xf32>
    %14 = arith.addf %11, %13 : vector<8x128xf32>
    %c12 = arith.constant 12 : index
    %15 = memref.load %arg1[%c12] : memref<17xf32, #tpu.memory_space<smem>>
    %cst = arith.constant 5.000000e-01 : f32
    %16 = vector.broadcast %cst : f32 to vector<8x128xf32>
    %17 = arith.mulf %16, %14 : vector<8x128xf32>
    %18 = math.tanh %17 : vector<8x128xf32>
    %cst_6 = arith.constant 5.000000e-01 : f32
    %19 = vector.broadcast %cst_6 : f32 to vector<8x128xf32>
    %20 = arith.mulf %19, %18 : vector<8x128xf32>
    %cst_7 = arith.constant 5.000000e-01 : f32
    %21 = vector.broadcast %cst_7 : f32 to vector<8x128xf32>
    %22 = arith.addf %20, %21 : vector<8x128xf32>
    %23 = vector.broadcast %15 : f32 to vector<8x128xf32>
    %24 = arith.mulf %23, %22 : vector<8x128xf32>
    %25 = vector.broadcast %4 : f32 to vector<8x128xf32>
    %26 = arith.addf %25, %24 : vector<8x128xf32>
    %c2 = arith.constant 2 : index
    %27 = memref.load %arg1[%c2] : memref<17xf32, #tpu.memory_space<smem>>
    %28 = vector.broadcast %27 : f32 to vector<8x128xf32>
    %29 = arith.mulf %28, %1 : vector<8x128xf32>
    %c3 = arith.constant 3 : index
    %30 = memref.load %arg1[%c3] : memref<17xf32, #tpu.memory_space<smem>>
    %31 = vector.broadcast %30 : f32 to vector<8x128xf32>
    %32 = arith.mulf %31, %3 : vector<8x128xf32>
    %33 = arith.addf %29, %32 : vector<8x128xf32>
    %c9 = arith.constant 9 : index
    %34 = memref.load %arg1[%c9] : memref<17xf32, #tpu.memory_space<smem>>
    %35 = vector.broadcast %34 : f32 to vector<8x128xf32>
    %36 = arith.addf %33, %35 : vector<8x128xf32>
    %c13 = arith.constant 13 : index
    %37 = memref.load %arg1[%c13] : memref<17xf32, #tpu.memory_space<smem>>
    %cst_8 = arith.constant 5.000000e-01 : f32
    %38 = vector.broadcast %cst_8 : f32 to vector<8x128xf32>
    %39 = arith.mulf %38, %36 : vector<8x128xf32>
    %40 = math.tanh %39 : vector<8x128xf32>
    %cst_9 = arith.constant 5.000000e-01 : f32
    %41 = vector.broadcast %cst_9 : f32 to vector<8x128xf32>
    %42 = arith.mulf %41, %40 : vector<8x128xf32>
    %cst_10 = arith.constant 5.000000e-01 : f32
    %43 = vector.broadcast %cst_10 : f32 to vector<8x128xf32>
    %44 = arith.addf %42, %43 : vector<8x128xf32>
    %45 = vector.broadcast %37 : f32 to vector<8x128xf32>
    %46 = arith.mulf %45, %44 : vector<8x128xf32>
    %47 = arith.addf %26, %46 : vector<8x128xf32>
    %c4 = arith.constant 4 : index
    %48 = memref.load %arg1[%c4] : memref<17xf32, #tpu.memory_space<smem>>
    %49 = vector.broadcast %48 : f32 to vector<8x128xf32>
    %50 = arith.mulf %49, %1 : vector<8x128xf32>
    %c5 = arith.constant 5 : index
    %51 = memref.load %arg1[%c5] : memref<17xf32, #tpu.memory_space<smem>>
    %52 = vector.broadcast %51 : f32 to vector<8x128xf32>
    %53 = arith.mulf %52, %3 : vector<8x128xf32>
    %54 = arith.addf %50, %53 : vector<8x128xf32>
    %c10 = arith.constant 10 : index
    %55 = memref.load %arg1[%c10] : memref<17xf32, #tpu.memory_space<smem>>
    %56 = vector.broadcast %55 : f32 to vector<8x128xf32>
    %57 = arith.addf %54, %56 : vector<8x128xf32>
    %c14 = arith.constant 14 : index
    %58 = memref.load %arg1[%c14] : memref<17xf32, #tpu.memory_space<smem>>
    %cst_11 = arith.constant 5.000000e-01 : f32
    %59 = vector.broadcast %cst_11 : f32 to vector<8x128xf32>
    %60 = arith.mulf %59, %57 : vector<8x128xf32>
    %61 = math.tanh %60 : vector<8x128xf32>
    %cst_12 = arith.constant 5.000000e-01 : f32
    %62 = vector.broadcast %cst_12 : f32 to vector<8x128xf32>
    %63 = arith.mulf %62, %61 : vector<8x128xf32>
    %cst_13 = arith.constant 5.000000e-01 : f32
    %64 = vector.broadcast %cst_13 : f32 to vector<8x128xf32>
    %65 = arith.addf %63, %64 : vector<8x128xf32>
    %66 = vector.broadcast %58 : f32 to vector<8x128xf32>
    %67 = arith.mulf %66, %65 : vector<8x128xf32>
    %68 = arith.addf %47, %67 : vector<8x128xf32>
    %c6 = arith.constant 6 : index
    %69 = memref.load %arg1[%c6] : memref<17xf32, #tpu.memory_space<smem>>
    %70 = vector.broadcast %69 : f32 to vector<8x128xf32>
    %71 = arith.mulf %70, %1 : vector<8x128xf32>
    %c7 = arith.constant 7 : index
    %72 = memref.load %arg1[%c7] : memref<17xf32, #tpu.memory_space<smem>>
    %73 = vector.broadcast %72 : f32 to vector<8x128xf32>
    %74 = arith.mulf %73, %3 : vector<8x128xf32>
    %75 = arith.addf %71, %74 : vector<8x128xf32>
    %c11 = arith.constant 11 : index
    %76 = memref.load %arg1[%c11] : memref<17xf32, #tpu.memory_space<smem>>
    %77 = vector.broadcast %76 : f32 to vector<8x128xf32>
    %78 = arith.addf %75, %77 : vector<8x128xf32>
    %c15 = arith.constant 15 : index
    %79 = memref.load %arg1[%c15] : memref<17xf32, #tpu.memory_space<smem>>
    %cst_14 = arith.constant 5.000000e-01 : f32
    %80 = vector.broadcast %cst_14 : f32 to vector<8x128xf32>
    %81 = arith.mulf %80, %78 : vector<8x128xf32>
    %82 = math.tanh %81 : vector<8x128xf32>
    %cst_15 = arith.constant 5.000000e-01 : f32
    %83 = vector.broadcast %cst_15 : f32 to vector<8x128xf32>
    %84 = arith.mulf %83, %82 : vector<8x128xf32>
    %cst_16 = arith.constant 5.000000e-01 : f32
    %85 = vector.broadcast %cst_16 : f32 to vector<8x128xf32>
    %86 = arith.addf %84, %85 : vector<8x128xf32>
    %87 = vector.broadcast %79 : f32 to vector<8x128xf32>
    %88 = arith.mulf %87, %86 : vector<8x128xf32>
    %89 = arith.addf %68, %88 : vector<8x128xf32>
    %cst_17 = arith.constant 5.000000e-01 : f32
    %90 = vector.broadcast %cst_17 : f32 to vector<8x128xf32>
    %91 = arith.mulf %90, %89 : vector<8x128xf32>
    %92 = math.tanh %91 : vector<8x128xf32>
    %cst_18 = arith.constant 5.000000e-01 : f32
    %93 = vector.broadcast %cst_18 : f32 to vector<8x128xf32>
    %94 = arith.mulf %93, %92 : vector<8x128xf32>
    %cst_19 = arith.constant 5.000000e-01 : f32
    %95 = vector.broadcast %cst_19 : f32 to vector<8x128xf32>
    %96 = arith.addf %94, %95 : vector<8x128xf32>
    %c0_20 = arith.constant 0 : index
    %c0_21 = arith.constant 0 : index
    %97 = vector.load %arg3[%c0_20, %c0_21] : memref<8x128xf32, #tpu.memory_space<vmem>>, vector<8x128xf32>
    tpu.vector_store %arg3[%c0_20, %c0_21], %96 {strides = array<i32>} : memref<8x128xf32, #tpu.memory_space<vmem>>, vector<8x128xf32>,
    return
  }
  func.func @transform_0(%arg0: i32) -> i32 {
    %c0_i32 = arith.constant 0 : i32
    %c0_i32_0 = arith.constant 0 : i32
    return %c0_i32 : i32
  }
  func.func @transform_1(%arg0: i32) -> (i32, i32, i32) {
    %c0_i32 = arith.constant 0 : i32
    %c0_i32_0 = arith.constant 0 : i32
    %c0_i32_1 = arith.constant 0 : i32
    return %c0_i32, %arg0, %c0_i32_0 : i32, i32, i32
  }
  func.func @transform_2(%arg0: i32) -> (i32, i32) {
    %c0_i32 = arith.constant 0 : i32
    %c0_i32_0 = arith.constant 0 : i32
    return %arg0, %c0_i32 : i32, i32
  }
}

</mosaic_0001>

<llo_original>
// kernel: tpu_custom_call.1
$region0: #{tpu_custom_call.1}
  #allocation0 [shape = 'u32[]', space=smem, size = 0x4, offset = 0x4, fixed_abs, tag = 'smem constant byte address 0x4 - core index']
  #allocation1 [shape = 'u32[144,128]{1,0:T(1,128)}', space=vmem, size = 0x12000, scoped, tag = 'internal scratch']
  %s0 = inlined_call_operand.hbm [shape: f32[17], index: 0, kind: input, shape index: {}]
  %s1 = inlined_call_operand.hbm [shape: f32[2,8,128], index: 1, kind: input, shape index: {}]
  %s2 = inlined_call_operand.hbm [shape: f32[8,128], index: 2, kind: output, shape index: {}]
  %s3 = sld [smem:[#allocation0]]
  $region26: #{tpu_custom_call.1} parent=0
    _
  %s5 = ssub.s32 1, %s3
  %s6 = scalar_select 0, %s5, %s3
  $region1: #{tpu_custom_call.1} parent=0
    #allocation2 [shape = 'u8[512]{0}', space=smem, size = 0x200, scoped, tag = 'input window, operand 0, single buffered']
    #allocation3 [shape = 's32[1]{0}', space=sflag, size = 0x4, scoped, tag = 'scoped memory for tpu_custom_call.1']
    #allocation4 [shape = 's32[1]{0}', space=sflag, size = 0x4, scoped, tag = 'scoped memory for tpu_custom_call.1']
    #allocation5 [shape = 's32[1]{0}', space=sflag, size = 0x4, scoped, tag = 'scoped memory for tpu_custom_call.1']
    #allocation6 [shape = 'u8[8192]{0}', space=vmem, size = 0x2000, scoped, tag = 'input window, operand 1, single buffered']
    #allocation7 [shape = 'u8[4096]{0}', space=vmem, size = 0x1000, scoped, tag = 'output window, operand 0, single buffered']
    %7 = vsyncpa [#allocation5], 0
    %8 = vsyncpa [#allocation3], 0
    %9 = vsyncpa [#allocation4], 0
    // Predicated region
    $region2: #{tpu_custom_call.1} parent=1 // pred_check
      _
    $region3: #{tpu_custom_call.1} parent=1 // pred_check_branch
      %11 = sbr.rel (0) target = $region5
    $region4: #{tpu_custom_call.1} parent=1 // pred_region
      %s13 = ssub.s32 16, 16
      %14 = vsyncadd [#allocation5], %s13
      %17 = dma.hbm_to_smem %s0, 16, [#allocation2], [#allocation5]
    $region5: #{tpu_custom_call.1} parent=1 // pred_fallthru
      _
    // Predicated region
    $region6: #{tpu_custom_call.1} parent=1 // pred_check
      _
    $region7: #{tpu_custom_call.1} parent=1 // pred_check_branch
      %19 = sbr.rel (0) target = $region9
    $region8: #{tpu_custom_call.1} parent=1 // pred_region
      %s21 = ssub.s32 256, 256
      %22 = vsyncadd [#allocation3], %s21
      %s23 = sshll.u32 [#allocation6], 4
      %s24 = int_to_ptr.vmem [resolvable:$true] %s23
      %29 = dma.hbm_to_vmem [thread:$0]  %s1, 256, %s24, [#allocation3], 128, 128, 8
    $region9: #{tpu_custom_call.1} parent=1 // pred_fallthru
      _
    // Predicated region
    $region10: #{tpu_custom_call.1} parent=1 // pred_check
      _
    $region11: #{tpu_custom_call.1} parent=1 // pred_check_branch
      %31 = sbr.rel (0) target = $region13
    $region12: #{tpu_custom_call.1} parent=1 // pred_region
      %32 = dma.done [#allocation5], 16
    $region13: #{tpu_custom_call.1} parent=1 // pred_fallthru
      _
    // Predicated region
    $region14: #{tpu_custom_call.1} parent=1 // pred_check
      _
    $region15: #{tpu_custom_call.1} parent=1 // pred_check_branch
      %34 = sbr.rel (0) target = $region17
    $region16: #{tpu_custom_call.1} parent=1 // pred_region
      %35 = dma.done [#allocation3], 256
    $region17: #{tpu_custom_call.1} parent=1 // pred_fallthru
      _
    %36 = sfence
    %v37 = vld [vmem:[#allocation6] sm:$0xff]
    %s38 = scalar_lea.vmem [#allocation6], 8
    %v39 = vld [vmem:[%s38] sm:$0xff]
    %s40 = sld [smem:[#allocation2 + $0x10]]
    %s41 = sld [smem:[#allocation2]]
    %v42 = vstv %s41
    %v43 = vmul.f32 %v42, %v37
    %s44 = sld [smem:[#allocation2 + $0x1]]
    %v45 = vstv %s44
    %v46 = vmul.f32 %v45, %v39
    %v47 = vadd.f32 %v43, %v46
    %s48 = sld [smem:[#allocation2 + $0x8]]
    %v49 = vstv %s48
    %v50 = vadd.f32 %v47, %v49
    %s51 = sld [smem:[#allocation2 + $0xc]]
    %v52 = vmul.f32 %v50, 0.5
    %v53 = vtanh.pop %v52
    %v54 = vmul.f32 %v53, 0.5
    %v55 = vadd.f32 %v54, 0.5
    %v56 = vstv %s51
    %v57 = vmul.f32 %v56, %v55
    %v58 = vstv %s40
    %v59 = vadd.f32 %v58, %v57
    %s60 = sld [smem:[#allocation2 + $0x2]]
    %v61 = vstv %s60
    %v62 = vmul.f32 %v61, %v37
    %s63 = sld [smem:[#allocation2 + $0x3]]
    %v64 = vstv %s63
    %v65 = vmul.f32 %v64, %v39
    %v66 = vadd.f32 %v62, %v65
    %s67 = sld [smem:[#allocation2 + $0x9]]
    %v68 = vstv %s67
    %v69 = vadd.f32 %v66, %v68
    %s70 = sld [smem:[#allocation2 + $0xd]]
    %v71 = vmul.f32 %v69, 0.5
    %v72 = vtanh.pop %v71
    %v73 = vmul.f32 %v72, 0.5
    %v74 = vadd.f32 %v73, 0.5
    %v75 = vstv %s70
    %v76 = vmul.f32 %v75, %v74
    %v77 = vadd.f32 %v59, %v76
    %s78 = sld [smem:[#allocation2 + $0x4]]
    %v79 = vstv %s78
    %v80 = vmul.f32 %v79, %v37
    %s81 = sld [smem:[#allocation2 + $0x5]]
    %v82 = vstv %s81
    %v83 = vmul.f32 %v82, %v39
    %v84 = vadd.f32 %v80, %v83
    %s85 = sld [smem:[#allocation2 + $0xa]]
    %v86 = vstv %s85
    %v87 = vadd.f32 %v84, %v86
    %s88 = sld [smem:[#allocation2 + $0xe]]
    %v89 = vmul.f32 %v87, 0.5
    %v90 = vtanh.pop %v89
    %v91 = vmul.f32 %v90, 0.5
    %v92 = vadd.f32 %v91, 0.5
    %v93 = vstv %s88
    %v94 = vmul.f32 %v93, %v92
    %v95 = vadd.f32 %v77, %v94
    %s96 = sld [smem:[#allocation2 + $0x6]]
    %v97 = vstv %s96
    %v98 = vmul.f32 %v97, %v37
    %s99 = sld [smem:[#allocation2 + $0x7]]
    %v100 = vstv %s99
    %v101 = vmul.f32 %v100, %v39
    %v102 = vadd.f32 %v98, %v101
    %s103 = sld [smem:[#allocation2 + $0xb]]
    %v104 = vstv %s103
    %v105 = vadd.f32 %v102, %v104
    %s106 = sld [smem:[#allocation2 + $0xf]]
    %v107 = vmul.f32 %v105, 0.5
    %v108 = vtanh.pop %v107
    %v109 = vmul.f32 %v108, 0.5
    %v110 = vadd.f32 %v109, 0.5
    %v111 = vstv %s106
    %v112 = vmul.f32 %v111, %v110
    %v113 = vadd.f32 %v95, %v112
    %v114 = vmul.f32 %v113, 0.5
    %v115 = vtanh.pop %v114
    %v116 = vmul.f32 %v115, 0.5
    %v117 = vadd.f32 %v116, 0.5
    %118 = vst [vmem:[#allocation7] sm:$0xff] %v117
    // Predicated region
    $region18: #{tpu_custom_call.1} parent=1 // pred_check
      _
    $region19: #{tpu_custom_call.1} parent=1 // pred_check_branch
      %120 = sbr.rel (0) target = $region21
    $region20: #{tpu_custom_call.1} parent=1 // pred_region
      %s122 = ssub.s32 128, 128
      %123 = vsyncadd [#allocation4], %s122
      %s125 = sshll.u32 [#allocation7], 4
      %s126 = int_to_ptr.vmem [resolvable:$true] %s125
      %128 = dma.vmem_to_hbm [thread:$0]  %s126, 128, %s2, [#allocation4]
    $region21: #{tpu_custom_call.1} parent=1 // pred_fallthru
      _
    // Predicated region
    $region22: #{tpu_custom_call.1} parent=1 // pred_check
      _
    $region23: #{tpu_custom_call.1} parent=1 // pred_check_branch
      %130 = sbr.rel (0) target = $region25
    $region24: #{tpu_custom_call.1} parent=1 // pred_region
      %131 = dma.done [#allocation4], 128
    $region25: #{tpu_custom_call.1} parent=1 // pred_fallthru
      _
    %132 = vsyncpa [#allocation3], 1
    %133 = vsyncpa [#allocation4], 1
    %134 = vsyncpa [#allocation5], 1

</llo_original>
